<compile_context>
chip_gen: v5e
topology: v5e:2x2
jax: 0.10.0
libtpu: 0.0.40
codegen_flags: <defaults>
</compile_context>

<pallas_src>
import math

import jax
import jax.numpy as jnp
from jax.experimental import pallas as pl
from jax.experimental.pallas import tpu as pltpu


_MAX_PACK = 32   # guard: larger pack factors (e.g. D=3 -> R=128) would blow the
                 # block-diagonal weights far past VMEM; fall back to plain XLA instead.


def _round_up(x: int, m: int) -> int:
    return ((x + m - 1) // m) * m


def _lane_pack_factor(*dims: int) -> int:
    """Smallest R such that R*d is a multiple of 128 for every d in dims."""
    r = 1
    for d in dims:
        r = math.lcm(r, 128 // math.gcd(128, d))
    return r


def _pick_vmem_limit_bytes() -> int:
    """Generation-aware scoped-VMEM budget.

    v5e/v6e: 128 MiB physical VMEM (16/32 MiB default scoped); v7x: 64 MiB per
    TensorCore (32 MiB scoped).  32 MiB is safe on every generation and lifts v5e
    above its 16 MiB default so larger tiles can be pipelined.
    """
    try:
        cap = int(getattr(pltpu.get_tpu_info(), "vmem_capacity_bytes", 64 * 2**20))
    except Exception:
        cap = 64 * 2**20
    return int(min(32 * 2**20, cap // 2))


def _bayes_forward_kernel(z_ref, phi_ref, w1_ref, b1_ref, w2_ref, b2_ref, out_ref):
    """One row-tile of the aleatoric affine-flow forward (lane-packed layout).

    Matmuls run in the weights' dtype (bf16 by default -> fast MXU path) with f32
    accumulation; bias add, tanh, exp and the affine transform stay in f32.
    """
    mm_dtype = w1_ref.dtype
    # Conditioner MLP layer 1 (block-diagonal kron(I_R, W1) weight, resident in VMEM).
    h = jnp.tanh(
        jnp.dot(phi_ref[...].astype(mm_dtype), w1_ref[...],
                preferred_element_type=jnp.float32)
        + b1_ref[...]
    )
    # Fused shift|log_scale head: single (R*H, 2*R*D) block-diagonal matmul; the two
    # halves are lane-aligned at a multiple of 128, so the static slices below are free.
    head = (
        jnp.dot(h.astype(mm_dtype), w2_ref[...], preferred_element_type=jnp.float32)
        + b2_ref[...]
    )
    rd = out_ref.shape[-1]
    shift = head[:, :rd]
    log_scale = head[:, rd:]
    # Aleatoric affine flow forward: b = z * exp(log_scale) + shift   (log_det unused).
    z = z_ref[...].astype(jnp.float32)
    out_ref[...] = (z * jnp.exp(log_scale) + shift).astype(out_ref.dtype)


def prepare_conditioner_params(w1, b1, w2, b2, *, latent_dim, matmul_dtype=jnp.bfloat16):
    """Once-per-parameter-set prep of lane-packed, block-diagonal conditioner weights.

    Hoist this out of the per-call path in production.  Returns
    (w1_wide, b1_wide, w2_wide, b2_wide): kron(I_R, W) weights in `matmul_dtype`
    (bf16 by default, fast MXU path) and tiled f32 biases, with the shift/log_scale
    head weights fused along the output dimension.
    """
    P, H = w1.shape
    D = latent_dim
    assert w2.shape == (H, 2 * D)
    R = _lane_pack_factor(D, P, H)
    if R > _MAX_PACK:
        raise ValueError(
            f"pack factor R={R} is too large for the block-diagonal kernel layout; "
            "use the plain-XLA fallback instead (bayes_model_forward handles this).")
    eye_r = jnp.eye(R, dtype=matmul_dtype)
    w1_wide = jnp.kron(eye_r, w1.astype(matmul_dtype))                     # (R*P, R*H)
    b1_wide = jnp.tile(b1.astype(jnp.float32).reshape(1, H), (1, R))       # (1, R*H)
    w2_shift, w2_scale = w2[:, :D], w2[:, D:]
    w2_wide = jnp.concatenate(                                             # (R*H, 2*R*D)
        [jnp.kron(eye_r, w2_shift.astype(matmul_dtype)),
         jnp.kron(eye_r, w2_scale.astype(matmul_dtype))], axis=1)
    b2_wide = jnp.concatenate(                                             # (1, 2*R*D)
        [jnp.tile(b2[:D].astype(jnp.float32).reshape(1, D), (1, R)),
         jnp.tile(b2[D:].astype(jnp.float32).reshape(1, D), (1, R))], axis=1)
    return w1_wide, b1_wide, w2_wide, b2_wide


def _reference_forward(z_al, phi, w1, b1, w2, b2):
    """Pure-JAX f32 reference of the same math (also the fallback for huge pack factors)."""
    bp, bx, one, D = z_al.shape
    phi2 = phi.reshape(-1, phi.shape[-1]).astype(jnp.float32)
    h = jnp.tanh(phi2 @ w1.astype(jnp.float32) + b1.astype(jnp.float32))
    params = h @ w2.astype(jnp.float32) + b2.astype(jnp.float32)
    shift, log_scale = params[:, :D], params[:, D:2 * D]
    b = z_al.reshape(-1, D).astype(jnp.float32) * jnp.exp(log_scale) + shift
    return b.reshape(z_al.shape).astype(z_al.dtype)


def bayes_model_forward(z_al, phi, w1, b1, w2, b2, *, wide_params=None,
                        matmul_dtype=jnp.bfloat16, block_rows_wide=1024):
    """BayesModel.forward: transform latent z_al to the flow variable b, conditioned on phi.

    z_al: (batch_phi, batch_x, 1, D)   phi: (batch_phi, batch_x, 1, P)
    w1: (P, H)  b1: (H,)  w2: (H, 2*D)  b2: (2*D,)    (conditioner MLP parameters)
    wide_params: optional output of prepare_conditioner_params (precompute it once per
                 parameter set; recomputed here only if not supplied).
    Returns b with the same shape/dtype as z_al.
    """
    assert z_al.ndim == 4 and phi.ndim == 4
    bp, bx, one, D = z_al.shape
    P = phi.shape[-1]
    H = w1.shape[1]
    assert phi.shape[:3] == (bp, bx, one)
    assert w2.shape == (H, 2 * D)
    N = bp * bx * one

    R = _lane_pack_factor(D, P, H)
    if R > _MAX_PACK:
        # Guard against pack-factor blowup: block-diag weights would not fit VMEM,
        # so use the plain-XLA path instead of spilling / OOM-ing.
        return _reference_forward(z_al, phi, w1, b1, w2, b2)

    if wide_params is None:
        wide_params = prepare_conditioner_params(
            w1, b1, w2, b2, latent_dim=D, matmul_dtype=matmul_dtype)
    w1_wide, b1_wide, w2_wide, b2_wide = wide_params
    assert w1_wide.shape == (R * P, R * H) and w2_wide.shape == (R * H, 2 * R * D)
    mm_it = jnp.dtype(w1_wide.dtype).itemsize

    # --- lane packing: R logical rows per wide row (free row-major reshape). ---
    n_r = _round_up(N, R)
    z2 = z_al.reshape(N, D)
    phi2 = phi.reshape(N, P)
    if n_r != N:
        # Rare case (N not a multiple of R): tiny tail pad.  Tile raggedness itself is
        # handled by the grid below, so no full-array pad is needed for tile alignment.
        z2 = jnp.pad(z2, ((0, n_r - N), (0, 0)))
        phi2 = jnp.pad(phi2, ((0, n_r - N), (0, 0)))
    n_wide = n_r // R
    z_wide = z2.reshape(n_wide, R * D)          # lane-dense view
    phi_wide = phi2.reshape(n_wide, R * P)      # lane-dense view

    # --- VMEM accounting: double-buffered I/O tiles + in-kernel f32 intermediates
    #     + resident (still double-buffered) weights, against a generation-aware budget.
    f32 = 4
    z_it = jnp.dtype(z_al.dtype).itemsize
    phi_it = jnp.dtype(phi.dtype).itemsize
    out_it = z_it
    per_wide_row = (
        2 * (R * D * z_it + R * P * phi_it + R * D * out_it)       # pipelined I/O (x2 bufs)
        + R * P * mm_it + R * H * (f32 + mm_it)                    # phi cast, h f32 + cast
        + 2 * R * D * f32                                          # fused head output (f32)
        + 3 * R * D * f32                                          # z f32, exp, affine temps
    )
    weight_bytes = 2 * (
        (R * P) * (R * H) * mm_it + (R * H) * (2 * R * D) * mm_it
        + (R * H + 2 * R * D) * f32
    )
    vmem_limit = _pick_vmem_limit_bytes()
    tile_budget = int(0.85 * vmem_limit) - weight_bytes
    tnw_cap = max(8, (tile_budget // per_wide_row) // 8 * 8)

    # --- tile choice: big tiles for HBM-roofline pipelining, but at least ~4 grid steps
    #     so dimension_semantics=("parallel",) can shard across v7x's 2 TensorCores.
    tnw = min(block_rows_wide, tnw_cap, max(8, _round_up(pl.cdiv(n_wide, 4), 8)))
    tnw = max(8, (tnw // 8) * 8)
    grid = (pl.cdiv(n_wide, tnw),)   # ragged last block is masked by Pallas (no jnp.pad)

    out = pl.pallas_call(
        _bayes_forward_kernel,
        out_shape=jax.ShapeDtypeStruct((n_wide, R * D), z_al.dtype),
        grid=grid,
        in_specs=[
            pl.BlockSpec((tnw, R * D), lambda i: (i, 0)),           # z   (lane-packed)
            pl.BlockSpec((tnw, R * P), lambda i: (i, 0)),           # phi (lane-packed)
            pl.BlockSpec((R * P, R * H), lambda i: (0, 0)),         # W1 block-diag (resident)
            pl.BlockSpec((1, R * H), lambda i: (0, 0)),             # b1 (f32)
            pl.BlockSpec((R * H, 2 * R * D), lambda i: (0, 0)),     # fused W2 shift|scale
            pl.BlockSpec((1, 2 * R * D), lambda i: (0, 0)),         # fused b2 (f32)
        ],
        out_specs=pl.BlockSpec((tnw, R * D), lambda i: (i, 0)),
        compiler_params=pltpu.CompilerParams(
            dimension_semantics=("parallel",),                      # megacore split on v7x
            vmem_limit_bytes=vmem_limit,
        ),
    )(z_wide, phi_wide, w1_wide, b1_wide, w2_wide, b2_wide)

    b = out.reshape(n_r, D)
    if n_r != N:
        b = b[:N]
    return b.reshape(bp, bx, one, D)


if __name__ == "__main__":
    key = jax.random.PRNGKey(0)
    k_z, k_phi, k_w1, k_b1, k_w2, k_b2 = jax.random.split(key, 6)

    # Small shapes consistent with the module's (batch_phi, batch_x, 1, feat) convention.
    batch_phi, batch_x = 2, 128
    D = 16        # latent / flow-variable dim
    P = 32        # phi (epistemic sample + concatenated conditioning) dim
    H = 32        # conditioner MLP hidden width

    z_al = jax.random.normal(k_z, (batch_phi, batch_x, 1, D), dtype=jnp.float32)
    phi = jax.random.normal(k_phi, (batch_phi, batch_x, 1, P), dtype=jnp.float32)

    # Deterministic conditioner-MLP parameters (synthetic init, no checkpoint).
    w1 = 0.1 * jax.random.normal(k_w1, (P, H), dtype=jnp.float32)
    b1 = 0.01 * jax.random.normal(k_b1, (H,), dtype=jnp.float32)
    w2 = 0.1 * jax.random.normal(k_w2, (H, 2 * D), dtype=jnp.float32)
    b2 = 0.01 * jax.random.normal(k_b2, (2 * D,), dtype=jnp.float32)

    # Hoisted once-per-parameter-set weight prep (bf16 MXU fast path, the default).
    wide_bf16 = prepare_conditioner_params(w1, b1, w2, b2, latent_dim=D)
    b_bf16 = jax.block_until_ready(
        bayes_model_forward(z_al, phi, w1, b1, w2, b2, wide_params=wide_bf16))

    # Documented f32-weights path (exact) for a tight correctness check.
    wide_f32 = prepare_conditioner_params(
        w1, b1, w2, b2, latent_dim=D, matmul_dtype=jnp.float32)
    b_f32 = jax.block_until_ready(
        bayes_model_forward(z_al, phi, w1, b1, w2, b2, wide_params=wide_f32))

    b_ref = _reference_forward(z_al, phi, w1, b1, w2, b2)
    assert b_bf16.shape == z_al.shape and b_f32.shape == z_al.shape
    assert jnp.allclose(b_f32, b_ref, atol=1e-5, rtol=1e-5)
    # bf16 matmuls (f32 accumulation) -> widened tolerance vs the f32 reference.
    assert jnp.allclose(b_bf16, b_ref, atol=3e-2, rtol=3e-2)

    print("KERNEL_OK")
</pallas_src>

<mosaic_0001>
module attributes {stable_mosaic.version = 11 : i64} {
  func.func @_bayes_forward_kernel(%arg0: i32, %arg1: memref<8x128xf32, #tpu.memory_space<vmem>>, %arg2: memref<8x256xf32, #tpu.memory_space<vmem>>, %arg3: memref<256x256xbf16, #tpu.memory_space<vmem>>, %arg4: memref<1x256xf32, #tpu.memory_space<vmem>>, %arg5: memref<256x256xbf16, #tpu.memory_space<vmem>>, %arg6: memref<1x256xf32, #tpu.memory_space<vmem>>, %arg7: memref<8x128xf32, #tpu.memory_space<vmem>>) attributes {dimension_semantics = [#tpu.dimension_semantics<parallel>], iteration_bounds = array<i64: 4>, scalar_prefetch = 0 : i64, scratch_operands = 0 : i64, tpu.core_type = #tpu.core_type<tc>, window_params = [{transform_indices = @transform_0, window_bounds = array<i64: 8, 128>}, {transform_indices = @transform_1, window_bounds = array<i64: 8, 256>}, {pipeline_mode = #tpu.pipeline_mode<synchronous>, transform_indices = @transform_2, window_bounds = array<i64: 256, 256>}, {pipeline_mode = #tpu.pipeline_mode<synchronous>, transform_indices = @transform_3, window_bounds = array<i64: 1, 256>}, {pipeline_mode = #tpu.pipeline_mode<synchronous>, transform_indices = @transform_4, window_bounds = array<i64: 256, 256>}, {pipeline_mode = #tpu.pipeline_mode<synchronous>, transform_indices = @transform_5, window_bounds = array<i64: 1, 256>}, {transform_indices = @transform_6, window_bounds = array<i64: 8, 128>}]} {
    %c0 = arith.constant 0 : index
    %c0_0 = arith.constant 0 : index
    %0 = vector.load %arg2[%c0, %c0_0] : memref<8x256xf32, #tpu.memory_space<vmem>>, vector<8x256xf32>
    %1 = arith.truncf %0 : vector<8x256xf32> to vector<8x256xbf16>
    %c0_1 = arith.constant 0 : index
    %c0_2 = arith.constant 0 : index
    %2 = vector.load %arg3[%c0_1, %c0_2] : memref<256x256xbf16, #tpu.memory_space<vmem>>, vector<256x256xbf16>
    %cst = arith.constant dense<0.000000e+00> : vector<8x256xf32>
    %3 = tpu.matmul %1, %2, %cst {dimension_numbers = #tpu.dot_dimension_numbers<[1], [0], [0], [1], [0, 0, 1, 1], [], []>} : vector<8x256xbf16>, vector<256x256xbf16>, vector<8x256xf32> -> vector<8x256xf32>
    %c0_3 = arith.constant 0 : index
    %c0_4 = arith.constant 0 : index
    %4 = vector.load %arg4[%c0_3, %c0_4] : memref<1x256xf32, #tpu.memory_space<vmem>>, vector<1x256xf32>
    %5 = vector.broadcast %4 : vector<1x256xf32> to vector<8x256xf32>
    %6 = arith.addf %3, %5 : vector<8x256xf32>
    %7 = math.tanh %6 : vector<8x256xf32>
    %8 = arith.truncf %7 : vector<8x256xf32> to vector<8x256xbf16>
    %c0_5 = arith.constant 0 : index
    %c0_6 = arith.constant 0 : index
    %9 = vector.load %arg5[%c0_5, %c0_6] : memref<256x256xbf16, #tpu.memory_space<vmem>>, vector<256x256xbf16>
    %cst_7 = arith.constant dense<0.000000e+00> : vector<8x256xf32>
    %10 = tpu.matmul %8, %9, %cst_7 {dimension_numbers = #tpu.dot_dimension_numbers<[1], [0], [0], [1], [0, 0, 1, 1], [], []>} : vector<8x256xbf16>, vector<256x256xbf16>, vector<8x256xf32> -> vector<8x256xf32>
    %c0_8 = arith.constant 0 : index
    %c0_9 = arith.constant 0 : index
    %11 = vector.load %arg6[%c0_8, %c0_9] : memref<1x256xf32, #tpu.memory_space<vmem>>, vector<1x256xf32>
    %12 = vector.broadcast %11 : vector<1x256xf32> to vector<8x256xf32>
    %13 = arith.addf %10, %12 : vector<8x256xf32>
    %14 = vector.extract_strided_slice %13 {offsets = [0, 0], sizes = [8, 128], strides = [1, 1]} : vector<8x256xf32> to vector<8x128xf32>
    %15 = vector.extract_strided_slice %13 {offsets = [0, 128], sizes = [8, 128], strides = [1, 1]} : vector<8x256xf32> to vector<8x128xf32>
    %c0_10 = arith.constant 0 : index
    %c0_11 = arith.constant 0 : index
    %16 = vector.load %arg1[%c0_10, %c0_11] : memref<8x128xf32, #tpu.memory_space<vmem>>, vector<8x128xf32>
    %17 = math.exp %15 : vector<8x128xf32>
    %18 = arith.mulf %16, %17 : vector<8x128xf32>
    %19 = arith.addf %18, %14 : vector<8x128xf32>
    %c0_12 = arith.constant 0 : index
    %c0_13 = arith.constant 0 : index
    %20 = vector.load %arg7[%c0_12, %c0_13] : memref<8x128xf32, #tpu.memory_space<vmem>>, vector<8x128xf32>
    tpu.vector_store %arg7[%c0_12, %c0_13], %19 {strides = array<i32>} : memref<8x128xf32, #tpu.memory_space<vmem>>, vector<8x128xf32>,
    return
  }
  func.func @transform_0(%arg0: i32) -> (i32, i32) {
    %c0_i32 = arith.constant 0 : i32
    %c0_i32_0 = arith.constant 0 : i32
    return %arg0, %c0_i32 : i32, i32
  }
  func.func @transform_1(%arg0: i32) -> (i32, i32) {
    %c0_i32 = arith.constant 0 : i32
    %c0_i32_0 = arith.constant 0 : i32
    return %arg0, %c0_i32 : i32, i32
  }
  func.func @transform_2(%arg0: i32) -> (i32, i32) {
    %c0_i32 = arith.constant 0 : i32
    %c0_i32_0 = arith.constant 0 : i32
    %c0_i32_1 = arith.constant 0 : i32
    return %c0_i32, %c0_i32_0 : i32, i32
  }
  func.func @transform_3(%arg0: i32) -> (i32, i32) {
    %c0_i32 = arith.constant 0 : i32
    %c0_i32_0 = arith.constant 0 : i32
    %c0_i32_1 = arith.constant 0 : i32
    return %c0_i32, %c0_i32_0 : i32, i32
  }
  func.func @transform_4(%arg0: i32) -> (i32, i32) {
    %c0_i32 = arith.constant 0 : i32
    %c0_i32_0 = arith.constant 0 : i32
    %c0_i32_1 = arith.constant 0 : i32
    return %c0_i32, %c0_i32_0 : i32, i32
  }
  func.func @transform_5(%arg0: i32) -> (i32, i32) {
    %c0_i32 = arith.constant 0 : i32
    %c0_i32_0 = arith.constant 0 : i32
    %c0_i32_1 = arith.constant 0 : i32
    return %c0_i32, %c0_i32_0 : i32, i32
  }
  func.func @transform_6(%arg0: i32) -> (i32, i32) {
    %c0_i32 = arith.constant 0 : i32
    %c0_i32_0 = arith.constant 0 : i32
    return %arg0, %c0_i32 : i32, i32
  }
}

</mosaic_0001>

<llo_original>
// kernel: tpu_custom_call.1
$region0: #{tpu_custom_call.1}
  #allocation0 [shape = 'u32[]', space=smem, size = 0x4, offset = 0x4, fixed_abs, tag = 'smem constant byte address 0x4 - core index']
  #allocation1 [shape = 'u32[72,128]{1,0:T(1,128)}', space=vmem, size = 0x9000, scoped, tag = 'internal scratch']
  %s0 = inlined_call_operand.hbm [shape: f32[32,128], index: 0, kind: input, shape index: {}]
  %s1 = inlined_call_operand.hbm [shape: f32[32,256], index: 1, kind: input, shape index: {}]
  %s2 = inlined_call_operand.hbm [shape: bf16[256,256], index: 2, kind: input, shape index: {}]
  %s3 = inlined_call_operand.vmem [shape: f32[1,256], index: 3, kind: input, shape index: {}]
  %s4 = inlined_call_operand.hbm [shape: bf16[256,256], index: 4, kind: input, shape index: {}]
  %s5 = inlined_call_operand.vmem [shape: f32[1,256], index: 5, kind: input, shape index: {}]
  %s6 = inlined_call_operand.hbm [shape: f32[32,128], index: 6, kind: output, shape index: {}]
  %s7 = sld [smem:[#allocation0]]
  $region73: #{tpu_custom_call.1} parent=0
    _
  %s9 = ssub.s32 1, %s7
  %s10 = scalar_select 0, %s9, %s7
  $region1: #{tpu_custom_call.1} parent=0
    #allocation2 [shape = 'u8[8192]{0}', space=vmem, size = 0x2000, scoped, tag = 'input window, operand 0']
    #allocation3 [shape = 's32[2]{0}', space=sflag, size = 0x8, scoped, tag = 'scoped memory for tpu_custom_call.1']
    #allocation4 [shape = 's32[2]{0}', space=sflag, size = 0x8, scoped, tag = 'scoped memory for tpu_custom_call.1']
    #allocation5 [shape = 'u8[16384]{0}', space=vmem, size = 0x4000, scoped, tag = 'input window, operand 1']
    #allocation6 [shape = 's32[2]{0}', space=sflag, size = 0x8, scoped, tag = 'scoped memory for tpu_custom_call.1']
    #allocation7 [shape = 'u8[131072]{0}', space=vmem, size = 0x20000, scoped, tag = 'input window, operand 2, single buffered']
    #allocation8 [shape = 'u8[131072]{0}', space=vmem, size = 0x20000, scoped, tag = 'input window, operand 4, single buffered']
    #allocation9 [shape = 's32[1]{0}', space=sflag, size = 0x4, scoped, tag = 'scoped memory for tpu_custom_call.1']
    #allocation10 [shape = 'u8[8192]{0}', space=vmem, size = 0x2000, scoped, tag = 'output window, operand 0']
    %11 = vsyncpa [#allocation3], 0
    %s12 = scalar_lea.sflag [#allocation3], 1
    %13 = vsyncpa %s12, 0
    %14 = vsyncpa [#allocation6], 0
    %s15 = scalar_lea.sflag [#allocation6], 1
    %16 = vsyncpa %s15, 0
    %17 = vsyncpa [#allocation9], 0
    %18 = vsyncpa [#allocation4], 0
    %s19 = scalar_lea.sflag [#allocation4], 1
    %20 = vsyncpa %s19, 0
    loop: start=0, step=1, limit=6
    $region2: #{tpu_custom_call.1} parent=1 // loop_pre_header
      _
    $region3: #{tpu_custom_call.1} parent=1 // loop_header
      %s22 = sphi 0, %s26
      %p23 = scmp.ge.s32.totalorder %s22, 6
      %s32 = sphi 0, %s34
      %s35 = sphi 0, %s32
      %s36 = sphi 0, %s35
      %s52 = sphi 0, %s36
      %s58 = sphi 0, %s60
      %s61 = sphi 0, %s58
      %s62 = sphi 0, %s61
      %s78 = sphi 0, %s62
      %s82 = sphi 0, %s82
      %s84 = sphi 0, %s82
      %s85 = sphi 0, %s84
      %s99 = sphi 0, %s85
      %s103 = sphi 0, %s103
      %s105 = sphi 0, %s103
      %s106 = sphi 0, %s105
      %s120 = sphi 0, %s106
      %s124 = sphi 0, %s124
      %s126 = sphi 0, %s124
      %s127 = sphi 0, %s126
      %s141 = sphi 0, %s127
      %s145 = sphi 0, %s145
      %s147 = sphi 0, %s145
      %s148 = sphi 0, %s147
      %s162 = sphi 0, %s148
      %s168 = sphi 0, %s170
      %s171 = sphi 0, %s168
      %s172 = sphi 0, %s171
      %s188 = sphi 0, %s172
    $region4: #{tpu_custom_call.1} parent=1 // loop_header_branch
      %25 = sbr.rel (%p23) target = $region8
    $region5: #{tpu_custom_call.1} parent=1 // loop_body
      %s27 = ssub.s32 %s22, 1
      %s28 = ssub.s32 %s22, 2
      %s29 = sadd.s32 %s22, 1
      %s30 = ssub.s32 %s22, %s29
      %p31 = scmp.eq.s32.totalorder %s30, 0
      %s33 = sadd.s32 %s32, 1
      %s34 = scalar_select %p31, %s32, %s33
      %p37 = pneg %p31
      %p38 = scmp.eq.s32.totalorder %s22, 3
      %p39 = por %p37, %p38
      %p40 = scmp.ne.s32.totalorder %s32, %s35
      %p41 = scmp.eq.s32.totalorder %s22, 0
      %p42 = por %p40, %p41
      %p43 = scmp.ne.s32.totalorder %s32, %s35
      %p44 = scmp.eq.s32.totalorder %s27, 3
      %p45 = por %p43, %p44
      %p46 = scmp.ne.s32.totalorder %s35, %s36
      %p47 = scmp.eq.s32.totalorder %s27, 0
      %p48 = por %p46, %p47
      %p49 = scmp.ne.s32.totalorder %s35, %s36
      %p50 = scmp.eq.s32.totalorder %s28, 3
      %p51 = por %p49, %p50
      %p53 = scmp.ne.s32.totalorder %s36, %s52
      %p54 = scmp.eq.s32.totalorder %s28, 0
      %p55 = por %p53, %p54
      %s56 = ssub.s32 %s22, %s29
      %p57 = scmp.eq.s32.totalorder %s56, 0
      %s59 = sadd.s32 %s58, 1
      %s60 = scalar_select %p57, %s58, %s59
      %p63 = pneg %p57
      %p64 = scmp.eq.s32.totalorder %s22, 3
      %p65 = por %p63, %p64
      %p66 = scmp.ne.s32.totalorder %s58, %s61
      %p67 = scmp.eq.s32.totalorder %s22, 0
      %p68 = por %p66, %p67
      %p69 = scmp.ne.s32.totalorder %s58, %s61
      %p70 = scmp.eq.s32.totalorder %s27, 3
      %p71 = por %p69, %p70
      %p72 = scmp.ne.s32.totalorder %s61, %s62
      %p73 = scmp.eq.s32.totalorder %s27, 0
      %p74 = por %p72, %p73
      %p75 = scmp.ne.s32.totalorder %s61, %s62
      %p76 = scmp.eq.s32.totalorder %s28, 3
      %p77 = por %p75, %p76
      %p79 = scmp.ne.s32.totalorder %s62, %s78
      %p80 = scmp.eq.s32.totalorder %s28, 0
      %p81 = por %p79, %p80
      %s83 = sadd.s32 %s82, 1
      %p86 = scmp.eq.s32.totalorder %s22, 3
      %p87 = scmp.ne.s32.totalorder %s82, %s84
      %p88 = scmp.eq.s32.totalorder %s22, 0
      %p89 = por %p87, %p88
      %p90 = scmp.ne.s32.totalorder %s82, %s84
      %p91 = scmp.eq.s32.totalorder %s27, 3
      %p92 = por %p90, %p91
      %p93 = scmp.ne.s32.totalorder %s84, %s85
      %p94 = scmp.eq.s32.totalorder %s27, 0
      %p95 = por %p93, %p94
      %p96 = scmp.ne.s32.totalorder %s84, %s85
      %p97 = scmp.eq.s32.totalorder %s28, 3
      %p98 = por %p96, %p97
      %p100 = scmp.ne.s32.totalorder %s85, %s99
      %p101 = scmp.eq.s32.totalorder %s28, 0
      %p102 = por %p100, %p101
      %s104 = sadd.s32 %s103, 1
      %p107 = scmp.eq.s32.totalorder %s22, 3
      %p108 = scmp.ne.s32.totalorder %s103, %s105
      %p109 = scmp.eq.s32.totalorder %s22, 0
      %p110 = por %p108, %p109
      %p111 = scmp.ne.s32.totalorder %s103, %s105
      %p112 = scmp.eq.s32.totalorder %s27, 3
      %p113 = por %p111, %p112
      %p114 = scmp.ne.s32.totalorder %s105, %s106
      %p115 = scmp.eq.s32.totalorder %s27, 0
      %p116 = por %p114, %p115
      %p117 = scmp.ne.s32.totalorder %s105, %s106
      %p118 = scmp.eq.s32.totalorder %s28, 3
      %p119 = por %p117, %p118
      %p121 = scmp.ne.s32.totalorder %s106, %s120
      %p122 = scmp.eq.s32.totalorder %s28, 0
      %p123 = por %p121, %p122
      %s125 = sadd.s32 %s124, 1
      %p128 = scmp.eq.s32.totalorder %s22, 3
      %p129 = scmp.ne.s32.totalorder %s124, %s126
      %p130 = scmp.eq.s32.totalorder %s22, 0
      %p131 = por %p129, %p130
      %p132 = scmp.ne.s32.totalorder %s124, %s126
      %p133 = scmp.eq.s32.totalorder %s27, 3
      %p134 = por %p132, %p133
      %p135 = scmp.ne.s32.totalorder %s126, %s127
      %p136 = scmp.eq.s32.totalorder %s27, 0
      %p137 = por %p135, %p136
      %p138 = scmp.ne.s32.totalorder %s126, %s127
      %p139 = scmp.eq.s32.totalorder %s28, 3
      %p140 = por %p138, %p139
      %p142 = scmp.ne.s32.totalorder %s127, %s141
      %p143 = scmp.eq.s32.totalorder %s28, 0
      %p144 = por %p142, %p143
      %s146 = sadd.s32 %s145, 1
      %p149 = scmp.eq.s32.totalorder %s22, 3
      %p150 = scmp.ne.s32.totalorder %s145, %s147
      %p151 = scmp.eq.s32.totalorder %s22, 0
      %p152 = por %p150, %p151
      %p153 = scmp.ne.s32.totalorder %s145, %s147
      %p154 = scmp.eq.s32.totalorder %s27, 3
      %p155 = por %p153, %p154
      %p156 = scmp.ne.s32.totalorder %s147, %s148
      %p157 = scmp.eq.s32.totalorder %s27, 0
      %p158 = por %p156, %p157
      %p159 = scmp.ne.s32.totalorder %s147, %s148
      %p160 = scmp.eq.s32.totalorder %s28, 3
      %p161 = por %p159, %p160
      %p163 = scmp.ne.s32.totalorder %s148, %s162
      %p164 = scmp.eq.s32.totalorder %s28, 0
      %p165 = por %p163, %p164
      %s166 = ssub.s32 %s22, %s29
      %p167 = scmp.eq.s32.totalorder %s166, 0
      %s169 = sadd.s32 %s168, 1
      %s170 = scalar_select %p167, %s168, %s169
      %p173 = pneg %p167
      %p174 = scmp.eq.s32.totalorder %s22, 3
      %p175 = por %p173, %p174
      %p176 = scmp.ne.s32.totalorder %s168, %s171
      %p177 = scmp.eq.s32.totalorder %s22, 0
      %p178 = por %p176, %p177
      %p179 = scmp.ne.s32.totalorder %s168, %s171
      %p180 = scmp.eq.s32.totalorder %s27, 3
      %p181 = por %p179, %p180
      %p182 = scmp.ne.s32.totalorder %s171, %s172
      %p183 = scmp.eq.s32.totalorder %s27, 0
      %p184 = por %p182, %p183
      %p185 = scmp.ne.s32.totalorder %s171, %s172
      %p186 = scmp.eq.s32.totalorder %s28, 3
      %p187 = por %p185, %p186
      %p189 = scmp.ne.s32.totalorder %s172, %s188
      %p190 = scmp.eq.s32.totalorder %s28, 0
      %p191 = por %p189, %p190
      %p192 = scmp.le.s32.totalorder 1, %s22
      %p193 = scmp.lt.s32.totalorder %s22, 5
      %p194 = pnand %p192, %p193
      %p195 = pneg %p194
      // Predicated region
      $region9: #{tpu_custom_call.1} parent=5 // pred_check
        _
      $region10: #{tpu_custom_call.1} parent=5 // pred_check_branch
        %197 = sbr.rel (%p194) target = $region12
      $region11: #{tpu_custom_call.1} parent=5 // pred_region
        %s198 = ssub.s32 %s22, 1
        // Predicated region
        $region13: #{tpu_custom_call.1} parent=11 // pred_check
          %p199 = pneg %p95
        $region14: #{tpu_custom_call.1} parent=11 // pred_check_branch
          %201 = sbr.rel (%p199) target = $region16
        $region15: #{tpu_custom_call.1} parent=11 // pred_region
          %203 = vsyncadd [#allocation6], 0
          %s204 = sshll.u32 %s2, 4
          %s205 = int_to_ptr.hbm [resolvable:$true] %s204
          %s206 = sshll.u32 [#allocation7], 4
          %s207 = int_to_ptr.vmem [resolvable:$true] %s206
          %212 = dma.hbm_to_vmem [thread:$0]  %s205, 4096, %s207, [#allocation6], 128, 128, 8
        $region16: #{tpu_custom_call.1} parent=11 // pred_fallthru
          _
        // Predicated region
        $region17: #{tpu_custom_call.1} parent=11 // pred_check
          %p213 = pneg %p116
        $region18: #{tpu_custom_call.1} parent=11 // pred_check_branch
          %215 = sbr.rel (%p213) target = $region20
        $region19: #{tpu_custom_call.1} parent=11 // pred_region
          _
        $region20: #{tpu_custom_call.1} parent=11 // pred_fallthru
          _
        // Predicated region
        $region21: #{tpu_custom_call.1} parent=11 // pred_check
          %p216 = pneg %p137
        $region22: #{tpu_custom_call.1} parent=11 // pred_check_branch
          %218 = sbr.rel (%p216) target = $region24
        $region23: #{tpu_custom_call.1} parent=11 // pred_region
          %220 = vsyncadd [#allocation9], 0
          %s221 = sshll.u32 %s4, 4
          %s222 = int_to_ptr.hbm [resolvable:$true] %s221
          %s223 = sshll.u32 [#allocation8], 4
          %s224 = int_to_ptr.vmem [resolvable:$true] %s223
          %229 = dma.hbm_to_vmem [thread:$0]  %s222, 4096, %s224, [#allocation9], 128, 128, 8
        $region24: #{tpu_custom_call.1} parent=11 // pred_fallthru
          _
        // Predicated region
        $region25: #{tpu_custom_call.1} parent=11 // pred_check
          %p230 = pneg %p158
        $region26: #{tpu_custom_call.1} parent=11 // pred_check_branch
          %232 = sbr.rel (%p230) target = $region28
        $region27: #{tpu_custom_call.1} parent=11 // pred_region
          _
        $region28: #{tpu_custom_call.1} parent=11 // pred_fallthru
          _
      $region12: #{tpu_custom_call.1} parent=5 // pred_fallthru
        _
      %p233 = scmp.lt.s32.totalorder %s22, 4
      // Predicated region
      $region29: #{tpu_custom_call.1} parent=5 // pred_check
        %p234 = pneg %p233
      $region30: #{tpu_custom_call.1} parent=5 // pred_check_branch
        %236 = sbr.rel (%p234) target = $region32
      $region31: #{tpu_custom_call.1} parent=5 // pred_region
        // Predicated region
        $region33: #{tpu_custom_call.1} parent=31 // pred_check
          %p237 = pneg %p42
        $region34: #{tpu_custom_call.1} parent=31 // pred_check_branch
          %239 = sbr.rel (%p237) target = $region36
        $region35: #{tpu_custom_call.1} parent=31 // pred_region
          %s240 = sand.u32 %s32, 1
          %s241 = scalar_lea.sflag [#allocation3], %s240
          %s242 = sand.u32 %s32, 1
          %s243 = smul.addr %s242, 8
          %s244 = scalar_lea.vmem [#allocation2], %s243
          %246 = vsyncadd %s241, 0
          %s247 = smul.addr %s22, 8
          %s248 = scalar_lea.hbm %s0, %s247
          %s250 = sshll.u32 %s248, 4
          %s251 = int_to_ptr.hbm [resolvable:$true] %s250
          %s252 = sshll.u32 %s244, 4
          %s253 = int_to_ptr.vmem [resolvable:$true] %s252
          %255 = dma.hbm_to_vmem [thread:$0]  %s251, 128, %s253, %s241
        $region36: #{tpu_custom_call.1} parent=31 // pred_fallthru
          _
        // Predicated region
        $region37: #{tpu_custom_call.1} parent=31 // pred_check
          %p256 = pneg %p68
        $region38: #{tpu_custom_call.1} parent=31 // pred_check_branch
          %258 = sbr.rel (%p256) target = $region40
        $region39: #{tpu_custom_call.1} parent=31 // pred_region
          %s259 = sand.u32 %s22, 1
          %s260 = scalar_lea.sflag [#allocation6], %s259
          %s261 = sand.u32 %s58, 1
          %s262 = smul.addr %s261, 16
          %s263 = scalar_lea.vmem [#allocation5], %s262
          %265 = vsyncadd %s260, 0
          %s266 = smul.addr %s22, 2
          %s267 = smul.addr %s266, 8
          %s268 = scalar_lea.hbm %s1, %s267
          %s270 = sshll.u32 %s268, 4
          %s271 = int_to_ptr.hbm [resolvable:$true] %s270
          %s272 = sshll.u32 %s263, 4
          %s273 = int_to_ptr.vmem [resolvable:$true] %s272
          %275 = dma.hbm_to_vmem [thread:$0]  %s271, 256, %s273, %s260
        $region40: #{tpu_custom_call.1} parent=31 // pred_fallthru
          _
      $region32: #{tpu_custom_call.1} parent=5 // pred_fallthru
        _
      %p276 = scmp.le.s32.totalorder 1, %s22
      %p277 = scmp.lt.s32.totalorder %s22, 5
      %p278 = pnand %p276, %p277
      %p279 = pneg %p278
      // Predicated region
      $region41: #{tpu_custom_call.1} parent=5 // pred_check
        _
      $region42: #{tpu_custom_call.1} parent=5 // pred_check_branch
        %281 = sbr.rel (%p278) target = $region44
      $region43: #{tpu_custom_call.1} parent=5 // pred_region
        %s282 = ssub.s32 %s22, 1
        %s283 = sand.u32 %s35, 1
        %s284 = scalar_lea.sflag [#allocation3], %s283
        %s285 = sand.u32 %s35, 1
        %s286 = smul.addr %s285, 8
        %s287 = scalar_lea.vmem [#allocation2], %s286
        // Predicated region
        $region45: #{tpu_custom_call.1} parent=43 // pred_check
          %p288 = pneg %p48
        $region46: #{tpu_custom_call.1} parent=43 // pred_check_branch
          %290 = sbr.rel (%p288) target = $region48
        $region47: #{tpu_custom_call.1} parent=43 // pred_region
          %292 = dma.done %s284, 128
        $region48: #{tpu_custom_call.1} parent=43 // pred_fallthru
          _
        %s293 = sand.u32 %s27, 1
        %s294 = scalar_lea.sflag [#allocation6], %s293
        %s295 = sand.u32 %s61, 1
        %s296 = smul.addr %s295, 16
        %s297 = scalar_lea.vmem [#allocation5], %s296
        // Predicated region
        $region49: #{tpu_custom_call.1} parent=43 // pred_check
          %p298 = pneg %p74
        $region50: #{tpu_custom_call.1} parent=43 // pred_check_branch
          %300 = sbr.rel (%p298) target = $region52
        $region51: #{tpu_custom_call.1} parent=43 // pred_region
          %302 = dma.done %s294, 256
        $region52: #{tpu_custom_call.1} parent=43 // pred_fallthru
          _
        // Predicated region
        $region53: #{tpu_custom_call.1} parent=43 // pred_check
          %p303 = pneg %p95
        $region54: #{tpu_custom_call.1} parent=43 // pred_check_branch
          %305 = sbr.rel (%p303) target = $region56
        $region55: #{tpu_custom_call.1} parent=43 // pred_region
          %307 = dma.done [#allocation6], 4096
        $region56: #{tpu_custom_call.1} parent=43 // pred_fallthru
          _
        // Predicated region
        $region57: #{tpu_custom_call.1} parent=43 // pred_check
          %p308 = pneg %p137
        $region58: #{tpu_custom_call.1} parent=43 // pred_check_branch
          %310 = sbr.rel (%p308) target = $region60
        $region59: #{tpu_custom_call.1} parent=43 // pred_region
          %312 = dma.done [#allocation9], 4096
        $region60: #{tpu_custom_call.1} parent=43 // pred_fallthru
          _
        %s313 = sand.u32 %s35, 1
        %s314 = scalar_lea.sflag [#allocation3], %s313
        %s315 = sand.u32 %s35, 1
        %s316 = smul.addr %s315, 8
        %s317 = scalar_lea.vmem [#allocation2], %s316
        %p318 = pneg %p48
        %p319 = pneg %p45
        %s320 = sand.u32 %s27, 1
        %s321 = scalar_lea.sflag [#allocation6], %s320
        %s322 = sand.u32 %s61, 1
        %s323 = smul.addr %s322, 16
        %s324 = scalar_lea.vmem [#allocation5], %s323
        %p325 = pneg %p74
        %p326 = pneg %p71
        %p327 = pneg %p95
        %p328 = pneg %p92
        %p329 = pneg %p116
        %p330 = pneg %p113
        %p331 = pneg %p137
        %p332 = pneg %p134
        %p333 = pneg %p158
        %p334 = pneg %p155
        %p335 = pneg %p184
        %p336 = pneg %p181
        %s337 = sand.u32 %s171, 1
        %s338 = scalar_lea.sflag [#allocation4], %s337
        %s339 = sand.u32 %s171, 1
        %s340 = smul.addr %s339, 8
        %s341 = scalar_lea.vmem [#allocation10], %s340
        %v342 = vld [vmem:[%s297] sm:$0xff]
        %v343 = vld [vmem:[%s297 + $0x8] sm:$0xff]
        %v344 = vpack.c.bf16 %v342, %v342
        %v345 = vpack.c.bf16 %v343, %v343
        %v346 = vld [vmem:[#allocation7] sm:$0xff]
        %v347 = vld [vmem:[#allocation7 + $0x8] sm:$0xff]
        %v348 = vld [vmem:[#allocation7 + $0x10] sm:$0xff]
        %v349 = vld [vmem:[#allocation7 + $0x18] sm:$0xff]
        %v350 = vld [vmem:[#allocation7 + $0x20] sm:$0xff]
        %v351 = vld [vmem:[#allocation7 + $0x28] sm:$0xff]
        %v352 = vld [vmem:[#allocation7 + $0x30] sm:$0xff]
        %v353 = vld [vmem:[#allocation7 + $0x38] sm:$0xff]
        %v354 = vld [vmem:[#allocation7 + $0x40] sm:$0xff]
        %v355 = vld [vmem:[#allocation7 + $0x48] sm:$0xff]
        %v356 = vld [vmem:[#allocation7 + $0x50] sm:$0xff]
        %v357 = vld [vmem:[#allocation7 + $0x58] sm:$0xff]
        %v358 = vld [vmem:[#allocation7 + $0x60] sm:$0xff]
        %v359 = vld [vmem:[#allocation7 + $0x68] sm:$0xff]
        %v360 = vld [vmem:[#allocation7 + $0x70] sm:$0xff]
        %v361 = vld [vmem:[#allocation7 + $0x78] sm:$0xff]
        %v362 = vld [vmem:[#allocation7 + $0x80] sm:$0xff]
        %v363 = vld [vmem:[#allocation7 + $0x88] sm:$0xff]
        %v364 = vld [vmem:[#allocation7 + $0x90] sm:$0xff]
        %v365 = vld [vmem:[#allocation7 + $0x98] sm:$0xff]
        %v366 = vld [vmem:[#allocation7 + $0xa0] sm:$0xff]
        %v367 = vld [vmem:[#allocation7 + $0xa8] sm:$0xff]
        %v368 = vld [vmem:[#allocation7 + $0xb0] sm:$0xff]
        %v369 = vld [vmem:[#allocation7 + $0xb8] sm:$0xff]
        %v370 = vld [vmem:[#allocation7 + $0xc0] sm:$0xff]
        %v371 = vld [vmem:[#allocation7 + $0xc8] sm:$0xff]
        %v372 = vld [vmem:[#allocation7 + $0xd0] sm:$0xff]
        %v373 = vld [vmem:[#allocation7 + $0xd8] sm:$0xff]
        %v374 = vld [vmem:[#allocation7 + $0xe0] sm:$0xff]
        %v375 = vld [vmem:[#allocation7 + $0xe8] sm:$0xff]
        %v376 = vld [vmem:[#allocation7 + $0xf0] sm:$0xff]
        %v377 = vld [vmem:[#allocation7 + $0xf8] sm:$0xff]
        %v378 = vld [vmem:[%s3] sm:$0x3]
        %v380 = vperm.slane %v378, 0
        %v381 = vperm.slane %v378, 1
        %v416 = vunpack.c.l.b16 %v346
        %v417 = vunpack.c.h.b16 %v346
        %v418 = vunpack.c.l.b16 %v347
        %v419 = vunpack.c.h.b16 %v347
        %v420 = vunpack.c.l.b16 %v348
        %v421 = vunpack.c.h.b16 %v348
        %v422 = vunpack.c.l.b16 %v349
        %v423 = vunpack.c.h.b16 %v349
        %v424 = vunpack.c.l.b16 %v350
        %v425 = vunpack.c.h.b16 %v350
        %v426 = vunpack.c.l.b16 %v351
        %v427 = vunpack.c.h.b16 %v351
        %v428 = vunpack.c.l.b16 %v352
        %v429 = vunpack.c.h.b16 %v352
        %v430 = vunpack.c.l.b16 %v353
        %v431 = vunpack.c.h.b16 %v353
        %v432 = vunpack.c.l.b16 %v354
        %v433 = vunpack.c.h.b16 %v354
        %v434 = vunpack.c.l.b16 %v355
        %v435 = vunpack.c.h.b16 %v355
        %v436 = vunpack.c.l.b16 %v356
        %v437 = vunpack.c.h.b16 %v356
        %v438 = vunpack.c.l.b16 %v357
        %v439 = vunpack.c.h.b16 %v357
        %v440 = vunpack.c.l.b16 %v358
        %v441 = vunpack.c.h.b16 %v358
        %v442 = vunpack.c.l.b16 %v359
        %v443 = vunpack.c.h.b16 %v359
        %v444 = vunpack.c.l.b16 %v360
        %v445 = vunpack.c.h.b16 %v360
        %v446 = vunpack.c.l.b16 %v361
        %v447 = vunpack.c.h.b16 %v361
        %v448 = vunpack.c.l.b16 %v362
        %v449 = vunpack.c.h.b16 %v362
        %v450 = vunpack.c.l.b16 %v363
        %v451 = vunpack.c.h.b16 %v363
        %v452 = vunpack.c.l.b16 %v364
        %v453 = vunpack.c.h.b16 %v364
        %v454 = vunpack.c.l.b16 %v365
        %v455 = vunpack.c.h.b16 %v365
        %v456 = vunpack.c.l.b16 %v366
        %v457 = vunpack.c.h.b16 %v366
        %v458 = vunpack.c.l.b16 %v367
        %v459 = vunpack.c.h.b16 %v367
        %v460 = vunpack.c.l.b16 %v368
        %v461 = vunpack.c.h.b16 %v368
        %v462 = vunpack.c.l.b16 %v369
        %v463 = vunpack.c.h.b16 %v369
        %v464 = vunpack.c.l.b16 %v370
        %v465 = vunpack.c.h.b16 %v370
        %v466 = vunpack.c.l.b16 %v371
        %v467 = vunpack.c.h.b16 %v371
        %v468 = vunpack.c.l.b16 %v372
        %v469 = vunpack.c.h.b16 %v372
        %v470 = vunpack.c.l.b16 %v373
        %v471 = vunpack.c.h.b16 %v373
        %v472 = vunpack.c.l.b16 %v374
        %v473 = vunpack.c.h.b16 %v374
        %v474 = vunpack.c.l.b16 %v375
        %v475 = vunpack.c.h.b16 %v375
        %v476 = vunpack.c.l.b16 %v376
        %v477 = vunpack.c.h.b16 %v376
        %v478 = vunpack.c.l.b16 %v377
        %v479 = vunpack.c.h.b16 %v377
        %v480 = vpack.c.b16 %v418, %v416
        %v481 = vpack.c.b16 %v419, %v417
        %v482 = vpack.c.b16 %v422, %v420
        %v483 = vpack.c.b16 %v423, %v421
        %v484 = vpack.c.b16 %v426, %v424
        %v485 = vpack.c.b16 %v427, %v425
        %v486 = vpack.c.b16 %v430, %v428
        %v487 = vpack.c.b16 %v431, %v429
        %v488 = vpack.c.b16 %v434, %v432
        %v489 = vpack.c.b16 %v435, %v433
        %v490 = vpack.c.b16 %v438, %v436
        %v491 = vpack.c.b16 %v439, %v437
        %v492 = vpack.c.b16 %v442, %v440
        %v493 = vpack.c.b16 %v443, %v441
        %v494 = vpack.c.b16 %v446, %v444
        %v495 = vpack.c.b16 %v447, %v445
        %v496 = vpack.c.b16 %v450, %v448
        %v497 = vpack.c.b16 %v451, %v449
        %v498 = vpack.c.b16 %v454, %v452
        %v499 = vpack.c.b16 %v455, %v453
        %v500 = vpack.c.b16 %v458, %v456
        %v501 = vpack.c.b16 %v459, %v457
        %v502 = vpack.c.b16 %v462, %v460
        %v503 = vpack.c.b16 %v463, %v461
        %v504 = vpack.c.b16 %v466, %v464
        %v505 = vpack.c.b16 %v467, %v465
        %v506 = vpack.c.b16 %v470, %v468
        %v507 = vpack.c.b16 %v471, %v469
        %v508 = vpack.c.b16 %v474, %v472
        %v509 = vpack.c.b16 %v475, %v473
        %v510 = vpack.c.b16 %v478, %v476
        %v511 = vpack.c.b16 %v479, %v477
        %544 = vmatpush.bf16.msra.mxu0 %v494
        %545 = vmatpush.bf16.msra.mxu0 %v492
        %546 = vmatpush.bf16.msra.mxu0 %v490
        %547 = vmatpush.bf16.msra.mxu0 %v488
        %548 = vmatpush.bf16.msra.mxu0 %v486
        %549 = vmatpush.bf16.msra.mxu0 %v484
        %550 = vmatpush.bf16.msra.mxu0 %v482
        %551 = vmatpush.bf16.msra.mxu0 %v480
        %552 = vmatmul.bf16.gmra.mxu0 %v344
        %v553 = vpop.f32.mrf.mxu0
        %v554 = vadd.f32 %v380, %v553
        %v555 = vpop.f32.mrf.mxu0
        %556 = vdwg.mxu0
        %557 = vmatpush.bf16.msra.mxu0 %v510
        %558 = vmatpush.bf16.msra.mxu0 %v508
        %559 = vmatpush.bf16.msra.mxu0 %v506
        %560 = vmatpush.bf16.msra.mxu0 %v504
        %561 = vmatpush.bf16.msra.mxu0 %v502
        %562 = vmatpush.bf16.msra.mxu0 %v500
        %563 = vmatpush.bf16.msra.mxu0 %v498
        %564 = vmatpush.bf16.msra.mxu0 %v496
        %565 = vmatmul.bf16.gmra.mxu0 %v345
        %v566 = vpop.f32.mrf.mxu0
        %v567 = vadd.f32 %v554, %v566
        %v568 = vpop.f32.mrf.mxu0
        %569 = vdwg.mxu0
        %570 = vmatpush.bf16.msra.mxu0 %v495
        %571 = vmatpush.bf16.msra.mxu0 %v493
        %572 = vmatpush.bf16.msra.mxu0 %v491
        %573 = vmatpush.bf16.msra.mxu0 %v489
        %574 = vmatpush.bf16.msra.mxu0 %v487
        %575 = vmatpush.bf16.msra.mxu0 %v485
        %576 = vmatpush.bf16.msra.mxu0 %v483
        %577 = vmatpush.bf16.msra.mxu0 %v481
        %578 = vmatmul.bf16.gmra.mxu0 %v344
        %v579 = vpop.f32.mrf.mxu0
        %v580 = vadd.f32 %v381, %v579
        %v581 = vpop.f32.mrf.mxu0
        %582 = vdwg.mxu0
        %583 = vmatpush.bf16.msra.mxu0 %v511
        %584 = vmatpush.bf16.msra.mxu0 %v509
        %585 = vmatpush.bf16.msra.mxu0 %v507
        %586 = vmatpush.bf16.msra.mxu0 %v505
        %587 = vmatpush.bf16.msra.mxu0 %v503
        %588 = vmatpush.bf16.msra.mxu0 %v501
        %589 = vmatpush.bf16.msra.mxu0 %v499
        %590 = vmatpush.bf16.msra.mxu0 %v497
        %591 = vmatmul.bf16.gmra.mxu0 %v345
        %v592 = vpop.f32.mrf.mxu0
        %v593 = vadd.f32 %v580, %v592
        %v594 = vpop.f32.mrf.mxu0
        %595 = vdwg.mxu0
        %v596 = vtanh.pop %v567
        %v597 = vtanh.pop %v593
        %v598 = vpack.c.bf16 %v596, %v596
        %v599 = vpack.c.bf16 %v597, %v597
        %v600 = vld [vmem:[#allocation8] sm:$0xff]
        %v601 = vld [vmem:[#allocation8 + $0x8] sm:$0xff]
        %v602 = vld [vmem:[#allocation8 + $0x10] sm:$0xff]
        %v603 = vld [vmem:[#allocation8 + $0x18] sm:$0xff]
        %v604 = vld [vmem:[#allocation8 + $0x20] sm:$0xff]
        %v605 = vld [vmem:[#allocation8 + $0x28] sm:$0xff]
        %v606 = vld [vmem:[#allocation8 + $0x30] sm:$0xff]
        %v607 = vld [vmem:[#allocation8 + $0x38] sm:$0xff]
        %v608 = vld [vmem:[#allocation8 + $0x40] sm:$0xff]
        %v609 = vld [vmem:[#allocation8 + $0x48] sm:$0xff]
        %v610 = vld [vmem:[#allocation8 + $0x50] sm:$0xff]
        %v611 = vld [vmem:[#allocation8 + $0x58] sm:$0xff]
        %v612 = vld [vmem:[#allocation8 + $0x60] sm:$0xff]
        %v613 = vld [vmem:[#allocation8 + $0x68] sm:$0xff]
        %v614 = vld [vmem:[#allocation8 + $0x70] sm:$0xff]
        %v615 = vld [vmem:[#allocation8 + $0x78] sm:$0xff]
        %v616 = vld [vmem:[#allocation8 + $0x80] sm:$0xff]
        %v617 = vld [vmem:[#allocation8 + $0x88] sm:$0xff]
        %v618 = vld [vmem:[#allocation8 + $0x90] sm:$0xff]
        %v619 = vld [vmem:[#allocation8 + $0x98] sm:$0xff]
        %v620 = vld [vmem:[#allocation8 + $0xa0] sm:$0xff]
        %v621 = vld [vmem:[#allocation8 + $0xa8] sm:$0xff]
        %v622 = vld [vmem:[#allocation8 + $0xb0] sm:$0xff]
        %v623 = vld [vmem:[#allocation8 + $0xb8] sm:$0xff]
        %v624 = vld [vmem:[#allocation8 + $0xc0] sm:$0xff]
        %v625 = vld [vmem:[#allocation8 + $0xc8] sm:$0xff]
        %v626 = vld [vmem:[#allocation8 + $0xd0] sm:$0xff]
        %v627 = vld [vmem:[#allocation8 + $0xd8] sm:$0xff]
        %v628 = vld [vmem:[#allocation8 + $0xe0] sm:$0xff]
        %v629 = vld [vmem:[#allocation8 + $0xe8] sm:$0xff]
        %v630 = vld [vmem:[#allocation8 + $0xf0] sm:$0xff]
        %v631 = vld [vmem:[#allocation8 + $0xf8] sm:$0xff]
        %v632 = vld [vmem:[%s5] sm:$0x3]
        %v634 = vperm.slane %v632, 0
        %v635 = vperm.slane %v632, 1
        %v670 = vunpack.c.l.b16 %v600
        %v671 = vunpack.c.h.b16 %v600
        %v672 = vunpack.c.l.b16 %v601
        %v673 = vunpack.c.h.b16 %v601
        %v674 = vunpack.c.l.b16 %v602
        %v675 = vunpack.c.h.b16 %v602
        %v676 = vunpack.c.l.b16 %v603
        %v677 = vunpack.c.h.b16 %v603
        %v678 = vunpack.c.l.b16 %v604
        %v679 = vunpack.c.h.b16 %v604
        %v680 = vunpack.c.l.b16 %v605
        %v681 = vunpack.c.h.b16 %v605
        %v682 = vunpack.c.l.b16 %v606
        %v683 = vunpack.c.h.b16 %v606
        %v684 = vunpack.c.l.b16 %v607
        %v685 = vunpack.c.h.b16 %v607
        %v686 = vunpack.c.l.b16 %v608
        %v687 = vunpack.c.h.b16 %v608
        %v688 = vunpack.c.l.b16 %v609
        %v689 = vunpack.c.h.b16 %v609
        %v690 = vunpack.c.l.b16 %v610
        %v691 = vunpack.c.h.b16 %v610
        %v692 = vunpack.c.l.b16 %v611
        %v693 = vunpack.c.h.b16 %v611
        %v694 = vunpack.c.l.b16 %v612
        %v695 = vunpack.c.h.b16 %v612
        %v696 = vunpack.c.l.b16 %v613
        %v697 = vunpack.c.h.b16 %v613
        %v698 = vunpack.c.l.b16 %v614
        %v699 = vunpack.c.h.b16 %v614
        %v700 = vunpack.c.l.b16 %v615
        %v701 = vunpack.c.h.b16 %v615
        %v702 = vunpack.c.l.b16 %v616
        %v703 = vunpack.c.h.b16 %v616
        %v704 = vunpack.c.l.b16 %v617
        %v705 = vunpack.c.h.b16 %v617
        %v706 = vunpack.c.l.b16 %v618
        %v707 = vunpack.c.h.b16 %v618
        %v708 = vunpack.c.l.b16 %v619
        %v709 = vunpack.c.h.b16 %v619
        %v710 = vunpack.c.l.b16 %v620
        %v711 = vunpack.c.h.b16 %v620
        %v712 = vunpack.c.l.b16 %v621
        %v713 = vunpack.c.h.b16 %v621
        %v714 = vunpack.c.l.b16 %v622
        %v715 = vunpack.c.h.b16 %v622
        %v716 = vunpack.c.l.b16 %v623
        %v717 = vunpack.c.h.b16 %v623
        %v718 = vunpack.c.l.b16 %v624
        %v719 = vunpack.c.h.b16 %v624
        %v720 = vunpack.c.l.b16 %v625
        %v721 = vunpack.c.h.b16 %v625
        %v722 = vunpack.c.l.b16 %v626
        %v723 = vunpack.c.h.b16 %v626
        %v724 = vunpack.c.l.b16 %v627
        %v725 = vunpack.c.h.b16 %v627
        %v726 = vunpack.c.l.b16 %v628
        %v727 = vunpack.c.h.b16 %v628
        %v728 = vunpack.c.l.b16 %v629
        %v729 = vunpack.c.h.b16 %v629
        %v730 = vunpack.c.l.b16 %v630
        %v731 = vunpack.c.h.b16 %v630
        %v732 = vunpack.c.l.b16 %v631
        %v733 = vunpack.c.h.b16 %v631
        %v734 = vpack.c.b16 %v672, %v670
        %v735 = vpack.c.b16 %v673, %v671
        %v736 = vpack.c.b16 %v676, %v674
        %v737 = vpack.c.b16 %v677, %v675
        %v738 = vpack.c.b16 %v680, %v678
        %v739 = vpack.c.b16 %v681, %v679
        %v740 = vpack.c.b16 %v684, %v682
        %v741 = vpack.c.b16 %v685, %v683
        %v742 = vpack.c.b16 %v688, %v686
        %v743 = vpack.c.b16 %v689, %v687
        %v744 = vpack.c.b16 %v692, %v690
        %v745 = vpack.c.b16 %v693, %v691
        %v746 = vpack.c.b16 %v696, %v694
        %v747 = vpack.c.b16 %v697, %v695
        %v748 = vpack.c.b16 %v700, %v698
        %v749 = vpack.c.b16 %v701, %v699
        %v750 = vpack.c.b16 %v704, %v702
        %v751 = vpack.c.b16 %v705, %v703
        %v752 = vpack.c.b16 %v708, %v706
        %v753 = vpack.c.b16 %v709, %v707
        %v754 = vpack.c.b16 %v712, %v710
        %v755 = vpack.c.b16 %v713, %v711
        %v756 = vpack.c.b16 %v716, %v714
        %v757 = vpack.c.b16 %v717, %v715
        %v758 = vpack.c.b16 %v720, %v718
        %v759 = vpack.c.b16 %v721, %v719
        %v760 = vpack.c.b16 %v724, %v722
        %v761 = vpack.c.b16 %v725, %v723
        %v762 = vpack.c.b16 %v728, %v726
        %v763 = vpack.c.b16 %v729, %v727
        %v764 = vpack.c.b16 %v732, %v730
        %v765 = vpack.c.b16 %v733, %v731
        %798 = vmatpush.bf16.msra.mxu0 %v748
        %799 = vmatpush.bf16.msra.mxu0 %v746
        %800 = vmatpush.bf16.msra.mxu0 %v744
        %801 = vmatpush.bf16.msra.mxu0 %v742
        %802 = vmatpush.bf16.msra.mxu0 %v740
        %803 = vmatpush.bf16.msra.mxu0 %v738
        %804 = vmatpush.bf16.msra.mxu0 %v736
        %805 = vmatpush.bf16.msra.mxu0 %v734
        %806 = vmatmul.bf16.gmra.mxu0 %v598
        %v807 = vpop.f32.mrf.mxu0
        %v808 = vadd.f32 %v634, %v807
        %v809 = vpop.f32.mrf.mxu0
        %810 = vdwg.mxu0
        %811 = vmatpush.bf16.msra.mxu0 %v764
        %812 = vmatpush.bf16.msra.mxu0 %v762
        %813 = vmatpush.bf16.msra.mxu0 %v760
        %814 = vmatpush.bf16.msra.mxu0 %v758
        %815 = vmatpush.bf16.msra.mxu0 %v756
        %816 = vmatpush.bf16.msra.mxu0 %v754
        %817 = vmatpush.bf16.msra.mxu0 %v752
        %818 = vmatpush.bf16.msra.mxu0 %v750
        %819 = vmatmul.bf16.gmra.mxu0 %v599
        %v820 = vpop.f32.mrf.mxu0
        %v821 = vadd.f32 %v808, %v820
        %v822 = vpop.f32.mrf.mxu0
        %823 = vdwg.mxu0
        %824 = vmatpush.bf16.msra.mxu0 %v749
        %825 = vmatpush.bf16.msra.mxu0 %v747
        %826 = vmatpush.bf16.msra.mxu0 %v745
        %827 = vmatpush.bf16.msra.mxu0 %v743
        %828 = vmatpush.bf16.msra.mxu0 %v741
        %829 = vmatpush.bf16.msra.mxu0 %v739
        %830 = vmatpush.bf16.msra.mxu0 %v737
        %831 = vmatpush.bf16.msra.mxu0 %v735
        %832 = vmatmul.bf16.gmra.mxu0 %v598
        %v833 = vpop.f32.mrf.mxu0
        %v834 = vadd.f32 %v635, %v833
        %v835 = vpop.f32.mrf.mxu0
        %836 = vdwg.mxu0
        %837 = vmatpush.bf16.msra.mxu0 %v765
        %838 = vmatpush.bf16.msra.mxu0 %v763
        %839 = vmatpush.bf16.msra.mxu0 %v761
        %840 = vmatpush.bf16.msra.mxu0 %v759
        %841 = vmatpush.bf16.msra.mxu0 %v757
        %842 = vmatpush.bf16.msra.mxu0 %v755
        %843 = vmatpush.bf16.msra.mxu0 %v753
        %844 = vmatpush.bf16.msra.mxu0 %v751
        %845 = vmatmul.bf16.gmra.mxu0 %v599
        %v846 = vpop.f32.mrf.mxu0
        %v847 = vadd.f32 %v834, %v846
        %v848 = vpop.f32.mrf.mxu0
        %849 = vdwg.mxu0
        %v850 = vld [vmem:[%s287] sm:$0xff]
        %v851 = vmul.f32 %v847, 1.442695
        %v852 = vpow.pop %v851
        %v853 = vmul.f32 %v850, %v852
        %v854 = vadd.f32 %v853, %v821
        %855 = vst [vmem:[%s341] sm:$0xff] %v854
        %s856 = sand.u32 %s171, 1
        %s857 = scalar_lea.sflag [#allocation4], %s856
        %s858 = sand.u32 %s171, 1
        %s859 = smul.addr %s858, 8
        %s860 = scalar_lea.vmem [#allocation10], %s859
        // Predicated region
        $region61: #{tpu_custom_call.1} parent=43 // pred_check
          %p861 = pneg %p181
        $region62: #{tpu_custom_call.1} parent=43 // pred_check_branch
          %863 = sbr.rel (%p861) target = $region64
        $region63: #{tpu_custom_call.1} parent=43 // pred_region
          %865 = vsyncadd %s857, 0
          %s866 = smul.addr %s27, 8
          %s867 = scalar_lea.hbm %s6, %s866
          %s869 = sshll.u32 %s860, 4
          %s870 = int_to_ptr.vmem [resolvable:$true] %s869
          %s871 = sshll.u32 %s867, 4
          %s872 = int_to_ptr.hbm [resolvable:$true] %s871
          %874 = dma.vmem_to_hbm [thread:$0]  %s870, 128, %s872, %s857
        $region64: #{tpu_custom_call.1} parent=43 // pred_fallthru
          _
      $region44: #{tpu_custom_call.1} parent=5 // pred_fallthru
        _
      %p875 = scmp.le.s32.totalorder 2, %s22
      // Predicated region
      $region65: #{tpu_custom_call.1} parent=5 // pred_check
        %p876 = pneg %p875
      $region66: #{tpu_custom_call.1} parent=5 // pred_check_branch
        %878 = sbr.rel (%p876) target = $region68
      $region67: #{tpu_custom_call.1} parent=5 // pred_region
        %s879 = ssub.s32 %s22, 2
        // Predicated region
        $region69: #{tpu_custom_call.1} parent=67 // pred_check
          %p880 = pneg %p187
        $region70: #{tpu_custom_call.1} parent=67 // pred_check_branch
          %882 = sbr.rel (%p880) target = $region72
        $region71: #{tpu_custom_call.1} parent=67 // pred_region
          %s883 = sand.u32 %s172, 1
          %s884 = scalar_lea.sflag [#allocation4], %s883
          %s885 = sand.u32 %s172, 1
          %s886 = smul.addr %s885, 8
          %s887 = scalar_lea.vmem [#allocation10], %s886
          %889 = dma.done %s884, 128
        $region72: #{tpu_custom_call.1} parent=67 // pred_fallthru
          _
      $region68: #{tpu_custom_call.1} parent=5 // pred_fallthru
        _
    $region6: #{tpu_custom_call.1} parent=1 // loop_footer
      %s26 = sadd.s32 1, %s22
    $region7: #{tpu_custom_call.1} parent=1 // loop_footer_branch
      %21 = sbr.rel target = $region3
    $region8: #{tpu_custom_call.1} parent=1 // loop_exit
      _
    %890 = vsyncpa [#allocation3], 1
    %s891 = scalar_lea.sflag [#allocation3], 1
    %892 = vsyncpa %s891, 1
    %893 = vsyncpa [#allocation6], 1
    %s894 = scalar_lea.sflag [#allocation6], 1
    %895 = vsyncpa %s894, 1
    %896 = vsyncpa [#allocation9], 1
    %897 = vsyncpa [#allocation4], 1
    %s898 = scalar_lea.sflag [#allocation4], 1
    %899 = vsyncpa %s898, 1

</llo_original>
